<compile_context>
chip_gen: v5e
topology: v5e:2x2
jax: 0.10.0
libtpu: 0.0.40
codegen_flags: <defaults>
</compile_context>

<pallas_src>
import jax
import jax.numpy as jnp
from jax.experimental import pallas as pl
from jax.experimental.pallas import tpu as pltpu


def conv3x3_elu_kernel(x_ref, w_ref, b_ref, o_ref):
    """Tap-fused 3x3 conv as ONE MXU contraction + bias + ELU (alpha=1).

    x_ref: (block_m, 3*(W+2)*Cin)  rows = (batch, output-row) pairs; lanes =
                                   [tap kh=0 | kh=1 | kh=2], each (W+2)*Cin wide
    w_ref: (3*(W+2)*Cin, W*Cout)   tap-fused banded (block-Toeplitz) weight
    b_ref: (1, W*Cout)             bias tiled per output column group
    o_ref: (block_m, W*Cout)       lane-dense output rows
    """
    y = jnp.dot(
        x_ref[...], w_ref[...],
        preferred_element_type=jnp.float32,
        # HIGHEST keeps strict f32 parity with the f32 PyTorch module; cast the
        # operands to bf16 (f32 accumulation) instead once shapes grow beyond
        # toy size and strict parity is no longer required.
        precision=jax.lax.Precision.HIGHEST,
    ) + b_ref[...]
    # ELU(alpha=1): x if x > 0 else exp(x) - 1.  The min() keeps exp() off the
    # discarded positive branch; exp(min(y,0)) - 1 == expm1(y) for y <= 0 up to
    # f32 rounding (plain exp is used for guaranteed Mosaic lowering support).
    o_ref[...] = jnp.where(y > 0, y,
                           jnp.exp(jnp.minimum(y, 0.0)) - 1.0).astype(o_ref.dtype)


def prepare_conv_block_params(weight_hwio, bias, W):
    """One-time parameter prep (hoist out of the per-step jit for inference).

    Builds the tap-fused banded weight so the padded-row layout contracts the
    horizontal taps, vertical taps, and Cin in a single K dimension:
      w_fused[kh*Wp*Cin + p*Cin + ci, w*Cout + co]
        = sum_kw weight[kh, kw, ci, co] * [p == w + kw],   Wp = W + 2.
    """
    Cin, Cout = weight_hwio.shape[2], weight_hwio.shape[3]
    Wp = W + 2
    # shift[kw, p, w] = (p == kw + w); built with elementwise select+sum so the
    # folding is exact in f32 (no matmul precision ambiguity in the weights).
    shift = (jnp.arange(Wp)[None, :, None] ==
             jnp.arange(3)[:, None, None] + jnp.arange(W)[None, None, :])
    w_band = (weight_hwio[:, :, None, :, None, :] *
              shift[None, :, :, None, :, None].astype(weight_hwio.dtype)
              ).sum(axis=1)                              # (3, Wp, Cin, W, Cout)
    w_fused = w_band.reshape(3 * Wp * Cin, W * Cout)     # kh-major K layout
    b_row = jnp.tile(bias, (W,)).reshape(1, W * Cout)
    return w_fused, b_row


@jax.jit
def conv_block_nhwc(x_nhwc, w_fused, b_row):
    """NHWC-native ConvBlock forward: (N, H, W, Cin) -> (N, H, W, Cout).

    Prefer this entry point (with pre-built params) when the surrounding graph
    is NHWC -- it avoids the NCHW<->NHWC HBM relayout passes entirely.
    """
    N, H, W, Cin = x_nhwc.shape
    if H < 2 or W < 2:
        raise ValueError("ReflectionPad2d(1) requires H >= 2 and W >= 2")
    Cout = b_row.shape[-1] // W
    Wp = W + 2
    K = 3 * Wp * Cin

    # ---- single small XLA prep pass over the activations ---------------------
    # reflect-pad, fold (W, Cin) onto lanes, fuse the 3 vertical taps on lanes,
    # and fold batch into M so one dot serves every (batch, row) pair.
    xp = jnp.pad(x_nhwc, ((0, 0), (1, 1), (1, 1), (0, 0)), mode="reflect")
    x_rows = xp.reshape(N, H + 2, Wp * Cin)
    x_tap = jnp.concatenate([x_rows[:, kh:kh + H] for kh in range(3)], axis=-1)
    x_flat = x_tap.reshape(N * H, K)                     # (M, 3*Wp*Cin)

    # ---- M tiling: one big block at toy size; multiple parallel steps when M
    # grows so each v7x TensorCore gets several pipelined iterations.
    M = N * H
    block_m = M
    for cand in (1024, 512, 256):
        if M % cand == 0 and M // cand >= 2:
            block_m = cand
            break

    out_flat = pl.pallas_call(
        conv3x3_elu_kernel,
        out_shape=jax.ShapeDtypeStruct((M, W * Cout), x_nhwc.dtype),
        grid=(M // block_m,),
        in_specs=[
            pl.BlockSpec((block_m, K), lambda m: (m, 0)),
            pl.BlockSpec((K, W * Cout), lambda m: (0, 0)),   # constant block
            pl.BlockSpec((1, W * Cout), lambda m: (0, 0)),   # constant block
        ],
        out_specs=pl.BlockSpec((block_m, W * Cout), lambda m: (m, 0)),
        compiler_params=pltpu.CompilerParams(
            dimension_semantics=("parallel",)),   # 2-way TC split on v7x
    )(x_flat, w_fused, b_row)

    return out_flat.reshape(N, H, W, Cout)


def conv_block(x_nchw, weight_hwio, bias):
    """Drop-in NCHW ConvBlock forward: (N, Cin, H, W) -> (N, Cout, H, W).

    Keeps PyTorch-module parity; prefer prepare_conv_block_params(...) +
    conv_block_nhwc(...) to skip the two relayout transposes below.
    """
    W = x_nchw.shape[3]
    w_fused, b_row = prepare_conv_block_params(weight_hwio, bias, W)
    x_nhwc = jnp.transpose(x_nchw, (0, 2, 3, 1))
    y = conv_block_nhwc(x_nhwc, w_fused, b_row)
    return jnp.transpose(y, (0, 3, 1, 2))


def reference_conv_block(x_nchw, weight_hwio, bias):
    """Pure-JAX elementwise reference (exact f32, no MXU precision ambiguity)."""
    N, Cin, H, W = x_nchw.shape
    Cout = weight_hwio.shape[-1]
    x = jnp.transpose(x_nchw, (0, 2, 3, 1))
    xp = jnp.pad(x, ((0, 0), (1, 1), (1, 1), (0, 0)), mode="reflect")
    y = jnp.zeros((N, H, W, Cout), jnp.float32)
    for kh in range(3):
        for kw in range(3):
            patch = xp[:, kh:kh + H, kw:kw + W, :]               # (N, H, W, Cin)
            y = y + jnp.sum(patch[..., None] * weight_hwio[kh, kw], axis=-2)
    y = y + bias
    y = jnp.where(y > 0, y, jnp.exp(jnp.minimum(y, 0.0)) - 1.0)
    return jnp.transpose(y, (0, 3, 1, 2))


if __name__ == "__main__":
    # ConvBlock(in_channels=4, out_channels=8) at small spatial size.
    N, Cin, Cout, H, W = 2, 4, 8, 16, 16

    key = jax.random.PRNGKey(0)
    kx, kw_, kb = jax.random.split(key, 3)

    x = jax.random.normal(kx, (N, Cin, H, W), dtype=jnp.float32)

    # PyTorch-style uniform(-1/sqrt(fan_in), +1/sqrt(fan_in)) init, HWIO layout.
    fan_in = Cin * 3 * 3
    bound = 1.0 / (fan_in ** 0.5)
    weight = jax.random.uniform(kw_, (3, 3, Cin, Cout), jnp.float32,
                                minval=-bound, maxval=bound)
    bias = jax.random.uniform(kb, (Cout,), jnp.float32,
                              minval=-bound, maxval=bound)

    # One-time parameter prep, hoisted out of the per-step jit (review item).
    w_fused, b_row = prepare_conv_block_params(weight, bias, W)

    # Preferred NHWC-native path (no NCHW<->NHWC HBM relayouts around the kernel).
    x_nhwc = jnp.transpose(x, (0, 2, 3, 1))
    out_nhwc = jax.block_until_ready(conv_block_nhwc(x_nhwc, w_fused, b_row))
    out = jnp.transpose(out_nhwc, (0, 3, 1, 2))

    # Drop-in NCHW wrapper (PyTorch ConvBlock signature parity).
    out2 = jax.block_until_ready(conv_block(x, weight, bias))

    ref = jax.block_until_ready(reference_conv_block(x, weight, bias))

    assert out.shape == (N, Cout, H, W)
    assert out2.shape == (N, Cout, H, W)
    err1 = float(jnp.max(jnp.abs(out - ref)))
    err2 = float(jnp.max(jnp.abs(out2 - ref)))
    assert jnp.allclose(out, ref, atol=1e-5, rtol=1e-4), err1
    assert jnp.allclose(out2, ref, atol=1e-5, rtol=1e-4), err2

    print("KERNEL_OK")
</pallas_src>

<mosaic_0001>
module attributes {stable_mosaic.version = 11 : i64} {
  func.func @conv3x3_elu_kernel(%arg0: i32, %arg1: memref<32x216xf32, #tpu.memory_space<vmem>>, %arg2: memref<216x128xf32, #tpu.memory_space<vmem>>, %arg3: memref<1x128xf32, #tpu.memory_space<vmem>>, %arg4: memref<32x128xf32, #tpu.memory_space<vmem>>) attributes {dimension_semantics = [#tpu.dimension_semantics<parallel>], iteration_bounds = array<i64: 1>, scalar_prefetch = 0 : i64, scratch_operands = 0 : i64, tpu.core_type = #tpu.core_type<tc>, window_params = [{transform_indices = @transform_0, window_bounds = array<i64: 32, 216>}, {pipeline_mode = #tpu.pipeline_mode<synchronous>, transform_indices = @transform_1, window_bounds = array<i64: 216, 128>}, {pipeline_mode = #tpu.pipeline_mode<synchronous>, transform_indices = @transform_2, window_bounds = array<i64: 1, 128>}, {transform_indices = @transform_3, window_bounds = array<i64: 32, 128>}]} {
    %c0 = arith.constant 0 : index
    %c0_0 = arith.constant 0 : index
    %0 = vector.load %arg1[%c0, %c0_0] : memref<32x216xf32, #tpu.memory_space<vmem>>, vector<32x216xf32>
    %c0_1 = arith.constant 0 : index
    %c0_2 = arith.constant 0 : index
    %1 = vector.load %arg2[%c0_1, %c0_2] : memref<216x128xf32, #tpu.memory_space<vmem>>, vector<216x128xf32>
    %cst = arith.constant dense<0.000000e+00> : vector<32x128xf32>
    %2 = tpu.matmul %0, %1, %cst {dimension_numbers = #tpu.dot_dimension_numbers<[1], [0], [0], [1], [0, 0, 1, 1], [], []>, precision = #tpu.contract_precision<fp32>} : vector<32x216xf32>, vector<216x128xf32>, vector<32x128xf32> -> vector<32x128xf32>
    %c0_3 = arith.constant 0 : index
    %c0_4 = arith.constant 0 : index
    %3 = vector.load %arg3[%c0_3, %c0_4] : memref<1x128xf32, #tpu.memory_space<vmem>>, vector<1x128xf32>
    %4 = vector.broadcast %3 : vector<1x128xf32> to vector<32x128xf32>
    %5 = arith.addf %2, %4 : vector<32x128xf32>
    %cst_5 = arith.constant 0.000000e+00 : f32
    %6 = vector.broadcast %cst_5 : f32 to vector<32x128xf32>
    %7 = arith.cmpf ogt, %5, %6 : vector<32x128xf32>
    %cst_6 = arith.constant 0.000000e+00 : f32
    %8 = vector.broadcast %cst_6 : f32 to vector<32x128xf32>
    %9 = arith.minimumf %5, %8 : vector<32x128xf32>
    %10 = math.exp %9 : vector<32x128xf32>
    %cst_7 = arith.constant 1.000000e+00 : f32
    %11 = vector.broadcast %cst_7 : f32 to vector<32x128xf32>
    %12 = arith.subf %10, %11 : vector<32x128xf32>
    %13 = arith.select %7, %5, %12 : vector<32x128xi1>, vector<32x128xf32>
    %c0_8 = arith.constant 0 : index
    %c0_9 = arith.constant 0 : index
    %14 = vector.load %arg4[%c0_8, %c0_9] : memref<32x128xf32, #tpu.memory_space<vmem>>, vector<32x128xf32>
    tpu.vector_store %arg4[%c0_8, %c0_9], %13 {strides = array<i32>} : memref<32x128xf32, #tpu.memory_space<vmem>>, vector<32x128xf32>,
    return
  }
  func.func @transform_0(%arg0: i32) -> (i32, i32) {
    %c0_i32 = arith.constant 0 : i32
    %c0_i32_0 = arith.constant 0 : i32
    return %arg0, %c0_i32 : i32, i32
  }
  func.func @transform_1(%arg0: i32) -> (i32, i32) {
    %c0_i32 = arith.constant 0 : i32
    %c0_i32_0 = arith.constant 0 : i32
    %c0_i32_1 = arith.constant 0 : i32
    return %c0_i32, %c0_i32_0 : i32, i32
  }
  func.func @transform_2(%arg0: i32) -> (i32, i32) {
    %c0_i32 = arith.constant 0 : i32
    %c0_i32_0 = arith.constant 0 : i32
    %c0_i32_1 = arith.constant 0 : i32
    return %c0_i32, %c0_i32_0 : i32, i32
  }
  func.func @transform_3(%arg0: i32) -> (i32, i32) {
    %c0_i32 = arith.constant 0 : i32
    %c0_i32_0 = arith.constant 0 : i32
    return %arg0, %c0_i32 : i32, i32
  }
}

</mosaic_0001>

<llo_original>
// kernel: conv_block_nhwc.1
$region0: #{conv_block_nhwc.1}
  #allocation0 [shape = 'u32[]', space=smem, size = 0x4, offset = 0x4, fixed_abs, tag = 'smem constant byte address 0x4 - core index']
  #allocation1 [shape = 'u32[72,128]{1,0:T(1,128)}', space=vmem, size = 0x9000, scoped, tag = 'internal scratch']
  %s0 = inlined_call_operand.vmem [shape: f32[32,216], index: 0, kind: input, shape index: {}]
  %s1 = inlined_call_operand.vmem [shape: f32[216,128], index: 1, kind: input, shape index: {}]
  %s2 = inlined_call_operand.vmem [shape: f32[1,128], index: 2, kind: input, shape index: {}]
  %s3 = inlined_call_operand.vmem [shape: f32[32,128], index: 3, kind: output, shape index: {}]
  %s4 = sld [smem:[#allocation0]]
  $region22: #{conv_block_nhwc.1} parent=0
    _
  %s6 = ssub.s32 1, %s4
  %s7 = scalar_select 0, %s6, %s4
  // Predicated region
  $region2: #{conv_block_nhwc.1} parent=0 // pred_check
    _
  $region3: #{conv_block_nhwc.1} parent=0 // pred_check_branch
    %9 = sbr.rel (0) target = $region5
  $region4: #{conv_block_nhwc.1} parent=0 // pred_region
    _
  $region5: #{conv_block_nhwc.1} parent=0 // pred_fallthru
    _
  // Predicated region
  $region6: #{conv_block_nhwc.1} parent=0 // pred_check
    _
  $region7: #{conv_block_nhwc.1} parent=0 // pred_check_branch
    %11 = sbr.rel (0) target = $region9
  $region8: #{conv_block_nhwc.1} parent=0 // pred_region
    _
  $region9: #{conv_block_nhwc.1} parent=0 // pred_fallthru
    _
  // Predicated region
  $region10: #{conv_block_nhwc.1} parent=0 // pred_check
    _
  $region11: #{conv_block_nhwc.1} parent=0 // pred_check_branch
    %13 = sbr.rel (0) target = $region13
  $region12: #{conv_block_nhwc.1} parent=0 // pred_region
    _
  $region13: #{conv_block_nhwc.1} parent=0 // pred_fallthru
    _
  %v14 = vld [vmem:[%s0] sm:$0xff]
  %v15 = vld [vmem:[%s0 + $0x8] sm:$0xff]
  %v16 = vld [vmem:[%s0 + $0x10] sm:$0xff]
  %v17 = vld [vmem:[%s0 + $0x18] sm:$0xff]
  %v18 = vld [vmem:[%s0 + $0x20] sm:$0xff]
  %v19 = vld [vmem:[%s0 + $0x28] sm:$0xff]
  %v20 = vld [vmem:[%s0 + $0x30] sm:$0xff]
  %v21 = vld [vmem:[%s0 + $0x38] sm:$0xff]
  %v22 = vld [vmem:[%s1] sm:$0xff]
  %v23 = vld [vmem:[%s1 + $0x8] sm:$0xff]
  %v24 = vld [vmem:[%s1 + $0x10] sm:$0xff]
  %v25 = vld [vmem:[%s1 + $0x18] sm:$0xff]
  %v26 = vld [vmem:[%s1 + $0x20] sm:$0xff]
  %v27 = vld [vmem:[%s1 + $0x28] sm:$0xff]
  %v28 = vld [vmem:[%s1 + $0x30] sm:$0xff]
  %v29 = vld [vmem:[%s1 + $0x38] sm:$0xff]
  %v30 = vld [vmem:[%s1 + $0x40] sm:$0xff]
  %v31 = vld [vmem:[%s1 + $0x48] sm:$0xff]
  %v32 = vld [vmem:[%s1 + $0x50] sm:$0xff]
  %v33 = vld [vmem:[%s1 + $0x58] sm:$0xff]
  %v34 = vld [vmem:[%s1 + $0x60] sm:$0xff]
  %v35 = vld [vmem:[%s1 + $0x68] sm:$0xff]
  %v36 = vld [vmem:[%s1 + $0x70] sm:$0xff]
  %v37 = vld [vmem:[%s1 + $0x78] sm:$0xff]
  %v38 = vld [vmem:[%s1 + $0x80] sm:$0xff]
  %v39 = vld [vmem:[%s1 + $0x88] sm:$0xff]
  %v40 = vld [vmem:[%s1 + $0x90] sm:$0xff]
  %v41 = vld [vmem:[%s1 + $0x98] sm:$0xff]
  %v42 = vld [vmem:[%s1 + $0xa0] sm:$0xff]
  %v43 = vld [vmem:[%s1 + $0xa8] sm:$0xff]
  %v44 = vld [vmem:[%s1 + $0xb0] sm:$0xff]
  %v45 = vld [vmem:[%s1 + $0xb8] sm:$0xff]
  %v46 = vld [vmem:[%s1 + $0xc0] sm:$0xff]
  %v47 = vld [vmem:[%s1 + $0xc8] sm:$0xff]
  %v48 = vld [vmem:[%s1 + $0xd0] sm:$0xff]
  %v49 = vld [vmem:[%s2] sm:$0x1]
  %v51 = vperm.slane %v49, 0
  %vm53 = vcmask 719872
  %v55 = vsel %vm53, %v15, 0
  %v58 = vsel %vm53, %v17, 0
  %v61 = vsel %vm53, %v19, 0
  %v64 = vsel %vm53, %v21, 0
  %v66 = vand.u32 %v37, 4294901760
  %67 = vmatpush.msra.mxu0 %v66
  %v68 = vand.u32 %v36, 4294901760
  %69 = vmatpush.msra.mxu0 %v68
  %v70 = vand.u32 %v35, 4294901760
  %71 = vmatpush.msra.mxu0 %v70
  %v72 = vand.u32 %v34, 4294901760
  %73 = vmatpush.msra.mxu0 %v72
  %v74 = vand.u32 %v33, 4294901760
  %75 = vmatpush.msra.mxu0 %v74
  %v76 = vand.u32 %v32, 4294901760
  %77 = vmatpush.msra.mxu0 %v76
  %v78 = vand.u32 %v31, 4294901760
  %79 = vmatpush.msra.mxu0 %v78
  %v80 = vand.u32 %v30, 4294901760
  %81 = vmatpush.msra.mxu0 %v80
  %v82 = vand.u32 %v29, 4294901760
  %83 = vmatpush.msra.mxu0 %v82
  %v84 = vand.u32 %v28, 4294901760
  %85 = vmatpush.msra.mxu0 %v84
  %v86 = vand.u32 %v27, 4294901760
  %87 = vmatpush.msra.mxu0 %v86
  %v88 = vand.u32 %v26, 4294901760
  %89 = vmatpush.msra.mxu0 %v88
  %v90 = vand.u32 %v25, 4294901760
  %91 = vmatpush.msra.mxu0 %v90
  %v92 = vand.u32 %v24, 4294901760
  %93 = vmatpush.msra.mxu0 %v92
  %v94 = vand.u32 %v23, 4294901760
  %95 = vmatpush.msra.mxu0 %v94
  %v96 = vand.u32 %v22, 4294901760
  %97 = vmatpush.msra.mxu0 %v96
  %v98 = vand.u32 %v14, 4294901760
  %v99 = vsub.f32 %v14, %v98
  %v100 = vand.u32 %v99, 4294901760
  %v101 = vsub.f32 %v99, %v100
  %v102 = vand.u32 %v101, 4294901760
  %103 = vmatmul.f32.gmra.mxu0 %v102
  %v104 = vpop.f32.mrf.mxu0
  %v105 = vadd.f32 %v51, %v104
  %v106 = vand.u32 %v16, 4294901760
  %v107 = vsub.f32 %v16, %v106
  %v108 = vand.u32 %v107, 4294901760
  %v109 = vsub.f32 %v107, %v108
  %v110 = vand.u32 %v109, 4294901760
  %111 = vmatmul.f32.gmra.mxu0 %v110
  %v112 = vpop.f32.mrf.mxu0
  %v113 = vadd.f32 %v51, %v112
  %v114 = vand.u32 %v18, 4294901760
  %v115 = vsub.f32 %v18, %v114
  %v116 = vand.u32 %v115, 4294901760
  %v117 = vsub.f32 %v115, %v116
  %v118 = vand.u32 %v117, 4294901760
  %119 = vmatmul.f32.gmra.mxu0 %v118
  %v120 = vpop.f32.mrf.mxu0
  %v121 = vadd.f32 %v51, %v120
  %v122 = vand.u32 %v20, 4294901760
  %v123 = vsub.f32 %v20, %v122
  %v124 = vand.u32 %v123, 4294901760
  %v125 = vsub.f32 %v123, %v124
  %v126 = vand.u32 %v125, 4294901760
  %127 = vmatmul.f32.gmra.mxu0 %v126
  %v128 = vpop.f32.mrf.mxu0
  %v129 = vadd.f32 %v51, %v128
  %130 = vdwg.mxu0
  %v131 = vand.u32 %v37, 4294901760
  %v132 = vsub.f32 %v37, %v131
  %v133 = vand.u32 %v132, 4294901760
  %v134 = vsub.f32 %v132, %v133
  %v135 = vand.u32 %v134, 4294901760
  %136 = vmatpush.msra.mxu0 %v135
  %v137 = vand.u32 %v36, 4294901760
  %v138 = vsub.f32 %v36, %v137
  %v139 = vand.u32 %v138, 4294901760
  %v140 = vsub.f32 %v138, %v139
  %v141 = vand.u32 %v140, 4294901760
  %142 = vmatpush.msra.mxu0 %v141
  %v143 = vand.u32 %v35, 4294901760
  %v144 = vsub.f32 %v35, %v143
  %v145 = vand.u32 %v144, 4294901760
  %v146 = vsub.f32 %v144, %v145
  %v147 = vand.u32 %v146, 4294901760
  %148 = vmatpush.msra.mxu0 %v147
  %v149 = vand.u32 %v34, 4294901760
  %v150 = vsub.f32 %v34, %v149
  %v151 = vand.u32 %v150, 4294901760
  %v152 = vsub.f32 %v150, %v151
  %v153 = vand.u32 %v152, 4294901760
  %154 = vmatpush.msra.mxu0 %v153
  %v155 = vand.u32 %v33, 4294901760
  %v156 = vsub.f32 %v33, %v155
  %v157 = vand.u32 %v156, 4294901760
  %v158 = vsub.f32 %v156, %v157
  %v159 = vand.u32 %v158, 4294901760
  %160 = vmatpush.msra.mxu0 %v159
  %v161 = vand.u32 %v32, 4294901760
  %v162 = vsub.f32 %v32, %v161
  %v163 = vand.u32 %v162, 4294901760
  %v164 = vsub.f32 %v162, %v163
  %v165 = vand.u32 %v164, 4294901760
  %166 = vmatpush.msra.mxu0 %v165
  %v167 = vand.u32 %v31, 4294901760
  %v168 = vsub.f32 %v31, %v167
  %v169 = vand.u32 %v168, 4294901760
  %v170 = vsub.f32 %v168, %v169
  %v171 = vand.u32 %v170, 4294901760
  %172 = vmatpush.msra.mxu0 %v171
  %v173 = vand.u32 %v30, 4294901760
  %v174 = vsub.f32 %v30, %v173
  %v175 = vand.u32 %v174, 4294901760
  %v176 = vsub.f32 %v174, %v175
  %v177 = vand.u32 %v176, 4294901760
  %178 = vmatpush.msra.mxu0 %v177
  %v179 = vand.u32 %v29, 4294901760
  %v180 = vsub.f32 %v29, %v179
  %v181 = vand.u32 %v180, 4294901760
  %v182 = vsub.f32 %v180, %v181
  %v183 = vand.u32 %v182, 4294901760
  %184 = vmatpush.msra.mxu0 %v183
  %v185 = vand.u32 %v28, 4294901760
  %v186 = vsub.f32 %v28, %v185
  %v187 = vand.u32 %v186, 4294901760
  %v188 = vsub.f32 %v186, %v187
  %v189 = vand.u32 %v188, 4294901760
  %190 = vmatpush.msra.mxu0 %v189
  %v191 = vand.u32 %v27, 4294901760
  %v192 = vsub.f32 %v27, %v191
  %v193 = vand.u32 %v192, 4294901760
  %v194 = vsub.f32 %v192, %v193
  %v195 = vand.u32 %v194, 4294901760
  %196 = vmatpush.msra.mxu0 %v195
  %v197 = vand.u32 %v26, 4294901760
  %v198 = vsub.f32 %v26, %v197
  %v199 = vand.u32 %v198, 4294901760
  %v200 = vsub.f32 %v198, %v199
  %v201 = vand.u32 %v200, 4294901760
  %202 = vmatpush.msra.mxu0 %v201
  %v203 = vand.u32 %v25, 4294901760
  %v204 = vsub.f32 %v25, %v203
  %v205 = vand.u32 %v204, 4294901760
  %v206 = vsub.f32 %v204, %v205
  %v207 = vand.u32 %v206, 4294901760
  %208 = vmatpush.msra.mxu0 %v207
  %v209 = vand.u32 %v24, 4294901760
  %v210 = vsub.f32 %v24, %v209
  %v211 = vand.u32 %v210, 4294901760
  %v212 = vsub.f32 %v210, %v211
  %v213 = vand.u32 %v212, 4294901760
  %214 = vmatpush.msra.mxu0 %v213
  %v215 = vand.u32 %v23, 4294901760
  %v216 = vsub.f32 %v23, %v215
  %v217 = vand.u32 %v216, 4294901760
  %v218 = vsub.f32 %v216, %v217
  %v219 = vand.u32 %v218, 4294901760
  %220 = vmatpush.msra.mxu0 %v219
  %v221 = vand.u32 %v22, 4294901760
  %v222 = vsub.f32 %v22, %v221
  %v223 = vand.u32 %v222, 4294901760
  %v224 = vsub.f32 %v222, %v223
  %v225 = vand.u32 %v224, 4294901760
  %226 = vmatpush.msra.mxu0 %v225
  %v227 = vand.u32 %v14, 4294901760
  %228 = vmatmul.f32.gmra.mxu0 %v227
  %v229 = vpop.f32.mrf.mxu0
  %v230 = vadd.f32 %v105, %v229
  %v231 = vand.u32 %v16, 4294901760
  %232 = vmatmul.f32.gmra.mxu0 %v231
  %v233 = vpop.f32.mrf.mxu0
  %v234 = vadd.f32 %v113, %v233
  %v235 = vand.u32 %v18, 4294901760
  %236 = vmatmul.f32.gmra.mxu0 %v235
  %v237 = vpop.f32.mrf.mxu0
  %v238 = vadd.f32 %v121, %v237
  %v239 = vand.u32 %v20, 4294901760
  %240 = vmatmul.f32.gmra.mxu0 %v239
  %v241 = vpop.f32.mrf.mxu0
  %v242 = vadd.f32 %v129, %v241
  %243 = vdwg.mxu0
  %v244 = vand.u32 %v37, 4294901760
  %v245 = vsub.f32 %v37, %v244
  %246 = vmatpush.msra.mxu0 %v245
  %v247 = vand.u32 %v36, 4294901760
  %v248 = vsub.f32 %v36, %v247
  %249 = vmatpush.msra.mxu0 %v248
  %v250 = vand.u32 %v35, 4294901760
  %v251 = vsub.f32 %v35, %v250
  %252 = vmatpush.msra.mxu0 %v251
  %v253 = vand.u32 %v34, 4294901760
  %v254 = vsub.f32 %v34, %v253
  %255 = vmatpush.msra.mxu0 %v254
  %v256 = vand.u32 %v33, 4294901760
  %v257 = vsub.f32 %v33, %v256
  %258 = vmatpush.msra.mxu0 %v257
  %v259 = vand.u32 %v32, 4294901760
  %v260 = vsub.f32 %v32, %v259
  %261 = vmatpush.msra.mxu0 %v260
  %v262 = vand.u32 %v31, 4294901760
  %v263 = vsub.f32 %v31, %v262
  %264 = vmatpush.msra.mxu0 %v263
  %v265 = vand.u32 %v30, 4294901760
  %v266 = vsub.f32 %v30, %v265
  %267 = vmatpush.msra.mxu0 %v266
  %v268 = vand.u32 %v29, 4294901760
  %v269 = vsub.f32 %v29, %v268
  %270 = vmatpush.msra.mxu0 %v269
  %v271 = vand.u32 %v28, 4294901760
  %v272 = vsub.f32 %v28, %v271
  %273 = vmatpush.msra.mxu0 %v272
  %v274 = vand.u32 %v27, 4294901760
  %v275 = vsub.f32 %v27, %v274
  %276 = vmatpush.msra.mxu0 %v275
  %v277 = vand.u32 %v26, 4294901760
  %v278 = vsub.f32 %v26, %v277
  %279 = vmatpush.msra.mxu0 %v278
  %v280 = vand.u32 %v25, 4294901760
  %v281 = vsub.f32 %v25, %v280
  %282 = vmatpush.msra.mxu0 %v281
  %v283 = vand.u32 %v24, 4294901760
  %v284 = vsub.f32 %v24, %v283
  %285 = vmatpush.msra.mxu0 %v284
  %v286 = vand.u32 %v23, 4294901760
  %v287 = vsub.f32 %v23, %v286
  %288 = vmatpush.msra.mxu0 %v287
  %v289 = vand.u32 %v22, 4294901760
  %v290 = vsub.f32 %v22, %v289
  %291 = vmatpush.msra.mxu0 %v290
  %v292 = vand.u32 %v14, 4294901760
  %v293 = vsub.f32 %v14, %v292
  %294 = vmatmul.f32.gmra.mxu0 %v293
  %v295 = vpop.f32.mrf.mxu0
  %v296 = vadd.f32 %v230, %v295
  %v297 = vand.u32 %v16, 4294901760
  %v298 = vsub.f32 %v16, %v297
  %299 = vmatmul.f32.gmra.mxu0 %v298
  %v300 = vpop.f32.mrf.mxu0
  %v301 = vadd.f32 %v234, %v300
  %v302 = vand.u32 %v18, 4294901760
  %v303 = vsub.f32 %v18, %v302
  %304 = vmatmul.f32.gmra.mxu0 %v303
  %v305 = vpop.f32.mrf.mxu0
  %v306 = vadd.f32 %v238, %v305
  %v307 = vand.u32 %v20, 4294901760
  %v308 = vsub.f32 %v20, %v307
  %309 = vmatmul.f32.gmra.mxu0 %v308
  %v310 = vpop.f32.mrf.mxu0
  %v311 = vadd.f32 %v242, %v310
  %312 = vdwg.mxu0
  %v313 = vand.u32 %v37, 4294901760
  %314 = vmatpush.msra.mxu0 %v313
  %v315 = vand.u32 %v36, 4294901760
  %316 = vmatpush.msra.mxu0 %v315
  %v317 = vand.u32 %v35, 4294901760
  %318 = vmatpush.msra.mxu0 %v317
  %v319 = vand.u32 %v34, 4294901760
  %320 = vmatpush.msra.mxu0 %v319
  %v321 = vand.u32 %v33, 4294901760
  %322 = vmatpush.msra.mxu0 %v321
  %v323 = vand.u32 %v32, 4294901760
  %324 = vmatpush.msra.mxu0 %v323
  %v325 = vand.u32 %v31, 4294901760
  %326 = vmatpush.msra.mxu0 %v325
  %v327 = vand.u32 %v30, 4294901760
  %328 = vmatpush.msra.mxu0 %v327
  %v329 = vand.u32 %v29, 4294901760
  %330 = vmatpush.msra.mxu0 %v329
  %v331 = vand.u32 %v28, 4294901760
  %332 = vmatpush.msra.mxu0 %v331
  %v333 = vand.u32 %v27, 4294901760
  %334 = vmatpush.msra.mxu0 %v333
  %v335 = vand.u32 %v26, 4294901760
  %336 = vmatpush.msra.mxu0 %v335
  %v337 = vand.u32 %v25, 4294901760
  %338 = vmatpush.msra.mxu0 %v337
  %v339 = vand.u32 %v24, 4294901760
  %340 = vmatpush.msra.mxu0 %v339
  %v341 = vand.u32 %v23, 4294901760
  %342 = vmatpush.msra.mxu0 %v341
  %v343 = vand.u32 %v22, 4294901760
  %344 = vmatpush.msra.mxu0 %v343
  %v345 = vand.u32 %v14, 4294901760
  %v346 = vsub.f32 %v14, %v345
  %v347 = vand.u32 %v346, 4294901760
  %348 = vmatmul.f32.gmra.mxu0 %v347
  %v349 = vpop.f32.mrf.mxu0
  %v350 = vadd.f32 %v296, %v349
  %v351 = vand.u32 %v16, 4294901760
  %v352 = vsub.f32 %v16, %v351
  %v353 = vand.u32 %v352, 4294901760
  %354 = vmatmul.f32.gmra.mxu0 %v353
  %v355 = vpop.f32.mrf.mxu0
  %v356 = vadd.f32 %v301, %v355
  %v357 = vand.u32 %v18, 4294901760
  %v358 = vsub.f32 %v18, %v357
  %v359 = vand.u32 %v358, 4294901760
  %360 = vmatmul.f32.gmra.mxu0 %v359
  %v361 = vpop.f32.mrf.mxu0
  %v362 = vadd.f32 %v306, %v361
  %v363 = vand.u32 %v20, 4294901760
  %v364 = vsub.f32 %v20, %v363
  %v365 = vand.u32 %v364, 4294901760
  %366 = vmatmul.f32.gmra.mxu0 %v365
  %v367 = vpop.f32.mrf.mxu0
  %v368 = vadd.f32 %v311, %v367
  %369 = vdwg.mxu0
  %v370 = vand.u32 %v37, 4294901760
  %v371 = vsub.f32 %v37, %v370
  %v372 = vand.u32 %v371, 4294901760
  %373 = vmatpush.msra.mxu0 %v372
  %v374 = vand.u32 %v36, 4294901760
  %v375 = vsub.f32 %v36, %v374
  %v376 = vand.u32 %v375, 4294901760
  %377 = vmatpush.msra.mxu0 %v376
  %v378 = vand.u32 %v35, 4294901760
  %v379 = vsub.f32 %v35, %v378
  %v380 = vand.u32 %v379, 4294901760
  %381 = vmatpush.msra.mxu0 %v380
  %v382 = vand.u32 %v34, 4294901760
  %v383 = vsub.f32 %v34, %v382
  %v384 = vand.u32 %v383, 4294901760
  %385 = vmatpush.msra.mxu0 %v384
  %v386 = vand.u32 %v33, 4294901760
  %v387 = vsub.f32 %v33, %v386
  %v388 = vand.u32 %v387, 4294901760
  %389 = vmatpush.msra.mxu0 %v388
  %v390 = vand.u32 %v32, 4294901760
  %v391 = vsub.f32 %v32, %v390
  %v392 = vand.u32 %v391, 4294901760
  %393 = vmatpush.msra.mxu0 %v392
  %v394 = vand.u32 %v31, 4294901760
  %v395 = vsub.f32 %v31, %v394
  %v396 = vand.u32 %v395, 4294901760
  %397 = vmatpush.msra.mxu0 %v396
  %v398 = vand.u32 %v30, 4294901760
  %v399 = vsub.f32 %v30, %v398
  %v400 = vand.u32 %v399, 4294901760
  %401 = vmatpush.msra.mxu0 %v400
  %v402 = vand.u32 %v29, 4294901760
  %v403 = vsub.f32 %v29, %v402
  %v404 = vand.u32 %v403, 4294901760
  %405 = vmatpush.msra.mxu0 %v404
  %v406 = vand.u32 %v28, 4294901760
  %v407 = vsub.f32 %v28, %v406
  %v408 = vand.u32 %v407, 4294901760
  %409 = vmatpush.msra.mxu0 %v408
  %v410 = vand.u32 %v27, 4294901760
  %v411 = vsub.f32 %v27, %v410
  %v412 = vand.u32 %v411, 4294901760
  %413 = vmatpush.msra.mxu0 %v412
  %v414 = vand.u32 %v26, 4294901760
  %v415 = vsub.f32 %v26, %v414
  %v416 = vand.u32 %v415, 4294901760
  %417 = vmatpush.msra.mxu0 %v416
  %v418 = vand.u32 %v25, 4294901760
  %v419 = vsub.f32 %v25, %v418
  %v420 = vand.u32 %v419, 4294901760
  %421 = vmatpush.msra.mxu0 %v420
  %v422 = vand.u32 %v24, 4294901760
  %v423 = vsub.f32 %v24, %v422
  %v424 = vand.u32 %v423, 4294901760
  %425 = vmatpush.msra.mxu0 %v424
  %v426 = vand.u32 %v23, 4294901760
  %v427 = vsub.f32 %v23, %v426
  %v428 = vand.u32 %v427, 4294901760
  %429 = vmatpush.msra.mxu0 %v428
  %v430 = vand.u32 %v22, 4294901760
  %v431 = vsub.f32 %v22, %v430
  %v432 = vand.u32 %v431, 4294901760
  %433 = vmatpush.msra.mxu0 %v432
  %v434 = vand.u32 %v14, 4294901760
  %435 = vmatmul.f32.gmra.mxu0 %v434
  %v436 = vpop.f32.mrf.mxu0
  %v437 = vadd.f32 %v350, %v436
  %v438 = vand.u32 %v16, 4294901760
  %439 = vmatmul.f32.gmra.mxu0 %v438
  %v440 = vpop.f32.mrf.mxu0
  %v441 = vadd.f32 %v356, %v440
  %v442 = vand.u32 %v18, 4294901760
  %443 = vmatmul.f32.gmra.mxu0 %v442
  %v444 = vpop.f32.mrf.mxu0
  %v445 = vadd.f32 %v362, %v444
  %v446 = vand.u32 %v20, 4294901760
  %447 = vmatmul.f32.gmra.mxu0 %v446
  %v448 = vpop.f32.mrf.mxu0
  %v449 = vadd.f32 %v368, %v448
  %450 = vdwg.mxu0
  %v451 = vand.u32 %v37, 4294901760
  %452 = vmatpush.msra.mxu0 %v451
  %v453 = vand.u32 %v36, 4294901760
  %454 = vmatpush.msra.mxu0 %v453
  %v455 = vand.u32 %v35, 4294901760
  %456 = vmatpush.msra.mxu0 %v455
  %v457 = vand.u32 %v34, 4294901760
  %458 = vmatpush.msra.mxu0 %v457
  %v459 = vand.u32 %v33, 4294901760
  %460 = vmatpush.msra.mxu0 %v459
  %v461 = vand.u32 %v32, 4294901760
  %462 = vmatpush.msra.mxu0 %v461
  %v463 = vand.u32 %v31, 4294901760
  %464 = vmatpush.msra.mxu0 %v463
  %v465 = vand.u32 %v30, 4294901760
  %466 = vmatpush.msra.mxu0 %v465
  %v467 = vand.u32 %v29, 4294901760
  %468 = vmatpush.msra.mxu0 %v467
  %v469 = vand.u32 %v28, 4294901760
  %470 = vmatpush.msra.mxu0 %v469
  %v471 = vand.u32 %v27, 4294901760
  %472 = vmatpush.msra.mxu0 %v471
  %v473 = vand.u32 %v26, 4294901760
  %474 = vmatpush.msra.mxu0 %v473
  %v475 = vand.u32 %v25, 4294901760
  %476 = vmatpush.msra.mxu0 %v475
  %v477 = vand.u32 %v24, 4294901760
  %478 = vmatpush.msra.mxu0 %v477
  %v479 = vand.u32 %v23, 4294901760
  %480 = vmatpush.msra.mxu0 %v479
  %v481 = vand.u32 %v22, 4294901760
  %482 = vmatpush.msra.mxu0 %v481
  %v483 = vand.u32 %v14, 4294901760
  %484 = vmatmul.f32.gmra.mxu0 %v483
  %v485 = vpop.f32.mrf.mxu0
  %v486 = vadd.f32 %v437, %v485
  %v487 = vand.u32 %v16, 4294901760
  %488 = vmatmul.f32.gmra.mxu0 %v487
  %v489 = vpop.f32.mrf.mxu0
  %v490 = vadd.f32 %v441, %v489
  %v491 = vand.u32 %v18, 4294901760
  %492 = vmatmul.f32.gmra.mxu0 %v491
  %v493 = vpop.f32.mrf.mxu0
  %v494 = vadd.f32 %v445, %v493
  %v495 = vand.u32 %v20, 4294901760
  %496 = vmatmul.f32.gmra.mxu0 %v495
  %v497 = vpop.f32.mrf.mxu0
  %v498 = vadd.f32 %v449, %v497
  %499 = vdwg.mxu0
  %500 = vmatpush.msra.mxu0 0.0
  %501 = vmatpush.msra.mxu0 0.0
  %502 = vmatpush.msra.mxu0 0.0
  %503 = vmatpush.msra.mxu0 0.0
  %504 = vmatpush.msra.mxu0 0.0
  %v505 = vand.u32 %v48, 4294901760
  %506 = vmatpush.msra.mxu0 %v505
  %v507 = vand.u32 %v47, 4294901760
  %508 = vmatpush.msra.mxu0 %v507
  %v509 = vand.u32 %v46, 4294901760
  %510 = vmatpush.msra.mxu0 %v509
  %v511 = vand.u32 %v45, 4294901760
  %512 = vmatpush.msra.mxu0 %v511
  %v513 = vand.u32 %v44, 4294901760
  %514 = vmatpush.msra.mxu0 %v513
  %v515 = vand.u32 %v43, 4294901760
  %516 = vmatpush.msra.mxu0 %v515
  %v517 = vand.u32 %v42, 4294901760
  %518 = vmatpush.msra.mxu0 %v517
  %v519 = vand.u32 %v41, 4294901760
  %520 = vmatpush.msra.mxu0 %v519
  %v521 = vand.u32 %v40, 4294901760
  %522 = vmatpush.msra.mxu0 %v521
  %v523 = vand.u32 %v39, 4294901760
  %524 = vmatpush.msra.mxu0 %v523
  %v525 = vand.u32 %v38, 4294901760
  %526 = vmatpush.msra.mxu0 %v525
  %v527 = vand.u32 %v55, 4294901760
  %v528 = vsub.f32 %v55, %v527
  %v529 = vand.u32 %v528, 4294901760
  %v530 = vsub.f32 %v528, %v529
  %v531 = vand.u32 %v530, 4294901760
  %532 = vmatmul.f32.gmra.mxu0 %v531
  %v533 = vpop.f32.mrf.mxu0
  %v534 = vadd.f32 %v486, %v533
  %v535 = vand.u32 %v58, 4294901760
  %v536 = vsub.f32 %v58, %v535
  %v537 = vand.u32 %v536, 4294901760
  %v538 = vsub.f32 %v536, %v537
  %v539 = vand.u32 %v538, 4294901760
  %540 = vmatmul.f32.gmra.mxu0 %v539
  %v541 = vpop.f32.mrf.mxu0
  %v542 = vadd.f32 %v490, %v541
  %v543 = vand.u32 %v61, 4294901760
  %v544 = vsub.f32 %v61, %v543
  %v545 = vand.u32 %v544, 4294901760
  %v546 = vsub.f32 %v544, %v545
  %v547 = vand.u32 %v546, 4294901760
  %548 = vmatmul.f32.gmra.mxu0 %v547
  %v549 = vpop.f32.mrf.mxu0
  %v550 = vadd.f32 %v494, %v549
  %v551 = vand.u32 %v64, 4294901760
  %v552 = vsub.f32 %v64, %v551
  %v553 = vand.u32 %v552, 4294901760
  %v554 = vsub.f32 %v552, %v553
  %v555 = vand.u32 %v554, 4294901760
  %556 = vmatmul.f32.gmra.mxu0 %v555
  %v557 = vpop.f32.mrf.mxu0
  %v558 = vadd.f32 %v498, %v557
  %559 = vdwg.mxu0
  %560 = vmatpush.msra.mxu0 0.0
  %561 = vmatpush.msra.mxu0 0.0
  %562 = vmatpush.msra.mxu0 0.0
  %563 = vmatpush.msra.mxu0 0.0
  %564 = vmatpush.msra.mxu0 0.0
  %v565 = vand.u32 %v48, 4294901760
  %v566 = vsub.f32 %v48, %v565
  %v567 = vand.u32 %v566, 4294901760
  %v568 = vsub.f32 %v566, %v567
  %v569 = vand.u32 %v568, 4294901760
  %570 = vmatpush.msra.mxu0 %v569
  %v571 = vand.u32 %v47, 4294901760
  %v572 = vsub.f32 %v47, %v571
  %v573 = vand.u32 %v572, 4294901760
  %v574 = vsub.f32 %v572, %v573
  %v575 = vand.u32 %v574, 4294901760
  %576 = vmatpush.msra.mxu0 %v575
  %v577 = vand.u32 %v46, 4294901760
  %v578 = vsub.f32 %v46, %v577
  %v579 = vand.u32 %v578, 4294901760
  %v580 = vsub.f32 %v578, %v579
  %v581 = vand.u32 %v580, 4294901760
  %582 = vmatpush.msra.mxu0 %v581
  %v583 = vand.u32 %v45, 4294901760
  %v584 = vsub.f32 %v45, %v583
  %v585 = vand.u32 %v584, 4294901760
  %v586 = vsub.f32 %v584, %v585
  %v587 = vand.u32 %v586, 4294901760
  %588 = vmatpush.msra.mxu0 %v587
  %v589 = vand.u32 %v44, 4294901760
  %v590 = vsub.f32 %v44, %v589
  %v591 = vand.u32 %v590, 4294901760
  %v592 = vsub.f32 %v590, %v591
  %v593 = vand.u32 %v592, 4294901760
  %594 = vmatpush.msra.mxu0 %v593
  %v595 = vand.u32 %v43, 4294901760
  %v596 = vsub.f32 %v43, %v595
  %v597 = vand.u32 %v596, 4294901760
  %v598 = vsub.f32 %v596, %v597
  %v599 = vand.u32 %v598, 4294901760
  %600 = vmatpush.msra.mxu0 %v599
  %v601 = vand.u32 %v42, 4294901760
  %v602 = vsub.f32 %v42, %v601
  %v603 = vand.u32 %v602, 4294901760
  %v604 = vsub.f32 %v602, %v603
  %v605 = vand.u32 %v604, 4294901760
  %606 = vmatpush.msra.mxu0 %v605
  %v607 = vand.u32 %v41, 4294901760
  %v608 = vsub.f32 %v41, %v607
  %v609 = vand.u32 %v608, 4294901760
  %v610 = vsub.f32 %v608, %v609
  %v611 = vand.u32 %v610, 4294901760
  %612 = vmatpush.msra.mxu0 %v611
  %v613 = vand.u32 %v40, 4294901760
  %v614 = vsub.f32 %v40, %v613
  %v615 = vand.u32 %v614, 4294901760
  %v616 = vsub.f32 %v614, %v615
  %v617 = vand.u32 %v616, 4294901760
  %618 = vmatpush.msra.mxu0 %v617
  %v619 = vand.u32 %v39, 4294901760
  %v620 = vsub.f32 %v39, %v619
  %v621 = vand.u32 %v620, 4294901760
  %v622 = vsub.f32 %v620, %v621
  %v623 = vand.u32 %v622, 4294901760
  %624 = vmatpush.msra.mxu0 %v623
  %v625 = vand.u32 %v38, 4294901760
  %v626 = vsub.f32 %v38, %v625
  %v627 = vand.u32 %v626, 4294901760
  %v628 = vsub.f32 %v626, %v627
  %v629 = vand.u32 %v628, 4294901760
  %630 = vmatpush.msra.mxu0 %v629
  %v631 = vand.u32 %v55, 4294901760
  %632 = vmatmul.f32.gmra.mxu0 %v631
  %v633 = vpop.f32.mrf.mxu0
  %v634 = vadd.f32 %v534, %v633
  %v635 = vand.u32 %v58, 4294901760
  %636 = vmatmul.f32.gmra.mxu0 %v635
  %v637 = vpop.f32.mrf.mxu0
  %v638 = vadd.f32 %v542, %v637
  %v639 = vand.u32 %v61, 4294901760
  %640 = vmatmul.f32.gmra.mxu0 %v639
  %v641 = vpop.f32.mrf.mxu0
  %v642 = vadd.f32 %v550, %v641
  %v643 = vand.u32 %v64, 4294901760
  %644 = vmatmul.f32.gmra.mxu0 %v643
  %v645 = vpop.f32.mrf.mxu0
  %v646 = vadd.f32 %v558, %v645
  %647 = vdwg.mxu0
  %648 = vmatpush.msra.mxu0 0.0
  %649 = vmatpush.msra.mxu0 0.0
  %650 = vmatpush.msra.mxu0 0.0
  %651 = vmatpush.msra.mxu0 0.0
  %652 = vmatpush.msra.mxu0 0.0
  %v653 = vand.u32 %v48, 4294901760
  %v654 = vsub.f32 %v48, %v653
  %655 = vmatpush.msra.mxu0 %v654
  %v656 = vand.u32 %v47, 4294901760
  %v657 = vsub.f32 %v47, %v656
  %658 = vmatpush.msra.mxu0 %v657
  %v659 = vand.u32 %v46, 4294901760
  %v660 = vsub.f32 %v46, %v659
  %661 = vmatpush.msra.mxu0 %v660
  %v662 = vand.u32 %v45, 4294901760
  %v663 = vsub.f32 %v45, %v662
  %664 = vmatpush.msra.mxu0 %v663
  %v665 = vand.u32 %v44, 4294901760
  %v666 = vsub.f32 %v44, %v665
  %667 = vmatpush.msra.mxu0 %v666
  %v668 = vand.u32 %v43, 4294901760
  %v669 = vsub.f32 %v43, %v668
  %670 = vmatpush.msra.mxu0 %v669
  %v671 = vand.u32 %v42, 4294901760
  %v672 = vsub.f32 %v42, %v671
  %673 = vmatpush.msra.mxu0 %v672
  %v674 = vand.u32 %v41, 4294901760
  %v675 = vsub.f32 %v41, %v674
  %676 = vmatpush.msra.mxu0 %v675
  %v677 = vand.u32 %v40, 4294901760
  %v678 = vsub.f32 %v40, %v677
  %679 = vmatpush.msra.mxu0 %v678
  %v680 = vand.u32 %v39, 4294901760
  %v681 = vsub.f32 %v39, %v680
  %682 = vmatpush.msra.mxu0 %v681
  %v683 = vand.u32 %v38, 4294901760
  %v684 = vsub.f32 %v38, %v683
  %685 = vmatpush.msra.mxu0 %v684
  %v686 = vand.u32 %v55, 4294901760
  %v687 = vsub.f32 %v55, %v686
  %688 = vmatmul.f32.gmra.mxu0 %v687
  %v689 = vpop.f32.mrf.mxu0
  %v690 = vadd.f32 %v634, %v689
  %v691 = vand.u32 %v58, 4294901760
  %v692 = vsub.f32 %v58, %v691
  %693 = vmatmul.f32.gmra.mxu0 %v692
  %v694 = vpop.f32.mrf.mxu0
  %v695 = vadd.f32 %v638, %v694
  %v696 = vand.u32 %v61, 4294901760
  %v697 = vsub.f32 %v61, %v696
  %698 = vmatmul.f32.gmra.mxu0 %v697
  %v699 = vpop.f32.mrf.mxu0
  %v700 = vadd.f32 %v642, %v699
  %v701 = vand.u32 %v64, 4294901760
  %v702 = vsub.f32 %v64, %v701
  %703 = vmatmul.f32.gmra.mxu0 %v702
  %v704 = vpop.f32.mrf.mxu0
  %v705 = vadd.f32 %v646, %v704
  %706 = vdwg.mxu0
  %707 = vmatpush.msra.mxu0 0.0
  %708 = vmatpush.msra.mxu0 0.0
  %709 = vmatpush.msra.mxu0 0.0
  %710 = vmatpush.msra.mxu0 0.0
  %711 = vmatpush.msra.mxu0 0.0
  %v712 = vand.u32 %v48, 4294901760
  %713 = vmatpush.msra.mxu0 %v712
  %v714 = vand.u32 %v47, 4294901760
  %715 = vmatpush.msra.mxu0 %v714
  %v716 = vand.u32 %v46, 4294901760
  %717 = vmatpush.msra.mxu0 %v716
  %v718 = vand.u32 %v45, 4294901760
  %719 = vmatpush.msra.mxu0 %v718
  %v720 = vand.u32 %v44, 4294901760
  %721 = vmatpush.msra.mxu0 %v720
  %v722 = vand.u32 %v43, 4294901760
  %723 = vmatpush.msra.mxu0 %v722
  %v724 = vand.u32 %v42, 4294901760
  %725 = vmatpush.msra.mxu0 %v724
  %v726 = vand.u32 %v41, 4294901760
  %727 = vmatpush.msra.mxu0 %v726
  %v728 = vand.u32 %v40, 4294901760
  %729 = vmatpush.msra.mxu0 %v728
  %v730 = vand.u32 %v39, 4294901760
  %731 = vmatpush.msra.mxu0 %v730
  %v732 = vand.u32 %v38, 4294901760
  %733 = vmatpush.msra.mxu0 %v732
  %v734 = vand.u32 %v55, 4294901760
  %v735 = vsub.f32 %v55, %v734
  %v736 = vand.u32 %v735, 4294901760
  %737 = vmatmul.f32.gmra.mxu0 %v736
  %v738 = vpop.f32.mrf.mxu0
  %v739 = vadd.f32 %v690, %v738
  %v740 = vand.u32 %v58, 4294901760
  %v741 = vsub.f32 %v58, %v740
  %v742 = vand.u32 %v741, 4294901760
  %743 = vmatmul.f32.gmra.mxu0 %v742
  %v744 = vpop.f32.mrf.mxu0
  %v745 = vadd.f32 %v695, %v744
  %v746 = vand.u32 %v61, 4294901760
  %v747 = vsub.f32 %v61, %v746
  %v748 = vand.u32 %v747, 4294901760
  %749 = vmatmul.f32.gmra.mxu0 %v748
  %v750 = vpop.f32.mrf.mxu0
  %v751 = vadd.f32 %v700, %v750
  %v752 = vand.u32 %v64, 4294901760
  %v753 = vsub.f32 %v64, %v752
  %v754 = vand.u32 %v753, 4294901760
  %755 = vmatmul.f32.gmra.mxu0 %v754
  %v756 = vpop.f32.mrf.mxu0
  %v757 = vadd.f32 %v705, %v756
  %758 = vdwg.mxu0
  %759 = vmatpush.msra.mxu0 0.0
  %760 = vmatpush.msra.mxu0 0.0
  %761 = vmatpush.msra.mxu0 0.0
  %762 = vmatpush.msra.mxu0 0.0
  %763 = vmatpush.msra.mxu0 0.0
  %v764 = vand.u32 %v48, 4294901760
  %v765 = vsub.f32 %v48, %v764
  %v766 = vand.u32 %v765, 4294901760
  %767 = vmatpush.msra.mxu0 %v766
  %v768 = vand.u32 %v47, 4294901760
  %v769 = vsub.f32 %v47, %v768
  %v770 = vand.u32 %v769, 4294901760
  %771 = vmatpush.msra.mxu0 %v770
  %v772 = vand.u32 %v46, 4294901760
  %v773 = vsub.f32 %v46, %v772
  %v774 = vand.u32 %v773, 4294901760
  %775 = vmatpush.msra.mxu0 %v774
  %v776 = vand.u32 %v45, 4294901760
  %v777 = vsub.f32 %v45, %v776
  %v778 = vand.u32 %v777, 4294901760
  %779 = vmatpush.msra.mxu0 %v778
  %v780 = vand.u32 %v44, 4294901760
  %v781 = vsub.f32 %v44, %v780
  %v782 = vand.u32 %v781, 4294901760
  %783 = vmatpush.msra.mxu0 %v782
  %v784 = vand.u32 %v43, 4294901760
  %v785 = vsub.f32 %v43, %v784
  %v786 = vand.u32 %v785, 4294901760
  %787 = vmatpush.msra.mxu0 %v786
  %v788 = vand.u32 %v42, 4294901760
  %v789 = vsub.f32 %v42, %v788
  %v790 = vand.u32 %v789, 4294901760
  %791 = vmatpush.msra.mxu0 %v790
  %v792 = vand.u32 %v41, 4294901760
  %v793 = vsub.f32 %v41, %v792
  %v794 = vand.u32 %v793, 4294901760
  %795 = vmatpush.msra.mxu0 %v794
  %v796 = vand.u32 %v40, 4294901760
  %v797 = vsub.f32 %v40, %v796
  %v798 = vand.u32 %v797, 4294901760
  %799 = vmatpush.msra.mxu0 %v798
  %v800 = vand.u32 %v39, 4294901760
  %v801 = vsub.f32 %v39, %v800
  %v802 = vand.u32 %v801, 4294901760
  %803 = vmatpush.msra.mxu0 %v802
  %v804 = vand.u32 %v38, 4294901760
  %v805 = vsub.f32 %v38, %v804
  %v806 = vand.u32 %v805, 4294901760
  %807 = vmatpush.msra.mxu0 %v806
  %v808 = vand.u32 %v55, 4294901760
  %809 = vmatmul.f32.gmra.mxu0 %v808
  %v810 = vpop.f32.mrf.mxu0
  %v811 = vadd.f32 %v739, %v810
  %v812 = vand.u32 %v58, 4294901760
  %813 = vmatmul.f32.gmra.mxu0 %v812
  %v814 = vpop.f32.mrf.mxu0
  %v815 = vadd.f32 %v745, %v814
  %v816 = vand.u32 %v61, 4294901760
  %817 = vmatmul.f32.gmra.mxu0 %v816
  %v818 = vpop.f32.mrf.mxu0
  %v819 = vadd.f32 %v751, %v818
  %v820 = vand.u32 %v64, 4294901760
  %821 = vmatmul.f32.gmra.mxu0 %v820
  %v822 = vpop.f32.mrf.mxu0
  %v823 = vadd.f32 %v757, %v822
  %824 = vdwg.mxu0
  %825 = vmatpush.msra.mxu0 0.0
  %826 = vmatpush.msra.mxu0 0.0
  %827 = vmatpush.msra.mxu0 0.0
  %828 = vmatpush.msra.mxu0 0.0
  %829 = vmatpush.msra.mxu0 0.0
  %v830 = vand.u32 %v48, 4294901760
  %831 = vmatpush.msra.mxu0 %v830
  %v832 = vand.u32 %v47, 4294901760
  %833 = vmatpush.msra.mxu0 %v832
  %v834 = vand.u32 %v46, 4294901760
  %835 = vmatpush.msra.mxu0 %v834
  %v836 = vand.u32 %v45, 4294901760
  %837 = vmatpush.msra.mxu0 %v836
  %v838 = vand.u32 %v44, 4294901760
  %839 = vmatpush.msra.mxu0 %v838
  %v840 = vand.u32 %v43, 4294901760
  %841 = vmatpush.msra.mxu0 %v840
  %v842 = vand.u32 %v42, 4294901760
  %843 = vmatpush.msra.mxu0 %v842
  %v844 = vand.u32 %v41, 4294901760
  %845 = vmatpush.msra.mxu0 %v844
  %v846 = vand.u32 %v40, 4294901760
  %847 = vmatpush.msra.mxu0 %v846
  %v848 = vand.u32 %v39, 4294901760
  %849 = vmatpush.msra.mxu0 %v848
  %v850 = vand.u32 %v38, 4294901760
  %851 = vmatpush.msra.mxu0 %v850
  %v852 = vand.u32 %v55, 4294901760
  %853 = vmatmul.f32.gmra.mxu0 %v852
  %v854 = vpop.f32.mrf.mxu0
  %v855 = vadd.f32 %v811, %v854
  %v856 = vand.u32 %v58, 4294901760
  %857 = vmatmul.f32.gmra.mxu0 %v856
  %v858 = vpop.f32.mrf.mxu0
  %v859 = vadd.f32 %v815, %v858
  %v860 = vand.u32 %v61, 4294901760
  %861 = vmatmul.f32.gmra.mxu0 %v860
  %v862 = vpop.f32.mrf.mxu0
  %v863 = vadd.f32 %v819, %v862
  %v864 = vand.u32 %v64, 4294901760
  %865 = vmatmul.f32.gmra.mxu0 %v864
  %v866 = vpop.f32.mrf.mxu0
  %v867 = vadd.f32 %v823, %v866
  %868 = vdwg.mxu0
  %vm869 = vcmp.gt.f32.partialorder %v855, 0.0
  %vm870 = vcmp.gt.f32.partialorder %v859, 0.0
  %vm871 = vcmp.gt.f32.partialorder %v863, 0.0
  %vm872 = vcmp.gt.f32.partialorder %v867, 0.0
  %v873 = vmin.f32 %v855, 0.0
  %v874 = vmin.f32 %v859, 0.0
  %v875 = vmin.f32 %v863, 0.0
  %v876 = vmin.f32 %v867, 0.0
  %v877 = vmul.f32 %v873, 1.442695
  %v878 = vpow.pop %v877
  %v879 = vmul.f32 %v874, 1.442695
  %v880 = vpow.pop %v879
  %v881 = vmul.f32 %v875, 1.442695
  %v882 = vpow.pop %v881
  %v883 = vmul.f32 %v876, 1.442695
  %v884 = vpow.pop %v883
  %v885 = vsub.f32 %v878, 1.0
  %v886 = vsub.f32 %v880, 1.0
  %v887 = vsub.f32 %v882, 1.0
  %v888 = vsub.f32 %v884, 1.0
  %v889 = vsel %vm869, %v855, %v885
  %v890 = vsel %vm870, %v859, %v886
  %v891 = vsel %vm871, %v863, %v887
  %v892 = vsel %vm872, %v867, %v888
  %893 = vst [vmem:[%s3] sm:$0xff] %v889
  %894 = vst [vmem:[%s3 + $0x8] sm:$0xff] %v890
  %895 = vst [vmem:[%s3 + $0x10] sm:$0xff] %v891
  %896 = vst [vmem:[%s3 + $0x18] sm:$0xff] %v892
  // Predicated region
  $region14: #{conv_block_nhwc.1} parent=0 // pred_check
    _
  $region15: #{conv_block_nhwc.1} parent=0 // pred_check_branch
    %898 = sbr.rel (0) target = $region17
  $region16: #{conv_block_nhwc.1} parent=0 // pred_region
    _
  $region17: #{conv_block_nhwc.1} parent=0 // pred_fallthru
    _
  // Predicated region
  $region18: #{conv_block_nhwc.1} parent=0 // pred_check
    _
  $region19: #{conv_block_nhwc.1} parent=0 // pred_check_branch
    %900 = sbr.rel (0) target = $region21
  $region20: #{conv_block_nhwc.1} parent=0 // pred_region
    _
  $region21: #{conv_block_nhwc.1} parent=0 // pred_fallthru
    _

</llo_original>
